<compile_context>
chip_gen: v5e
topology: v5e:2x2
jax: 0.10.0
libtpu: 0.0.40
codegen_flags: <defaults>
</compile_context>

<pallas_src>
import jax
import jax.numpy as jnp
from jax.experimental import pallas as pl
from jax.experimental.pallas import tpu as pltpu

SELU_ALPHA = 1.6732632423543772
SELU_SCALE = 1.0507009873554805


def _selu(x):
    # exp(min(x,0)) keeps the unselected branch finite (review correctness note).
    neg = SELU_ALPHA * (jnp.exp(jnp.minimum(x, 0.0)) - 1.0)
    return SELU_SCALE * jnp.where(x > 0.0, x, neg)


def _vmem_specs(n):
    return [pl.BlockSpec(memory_space=pltpu.MemorySpace.VMEM) for _ in range(n)]


# --------------------------- shared in-kernel head -------------------------- #

def _candidate_head(x_graph, x_unconn, cand_src, cand_dst, w1, b1, w2_row, b2):
    """Gather candidate rows from the virtually-stacked features and run the MLP head."""
    c = cand_src.shape[0]
    n_g = x_graph.shape[0]
    n_u = x_unconn.shape[0]
    f = x_graph.shape[1]                                     # 16

    col_g = jax.lax.broadcasted_iota(jnp.int32, (c, n_g), 1)          # stacked ids 0..N_g-1
    col_u = jax.lax.broadcasted_iota(jnp.int32, (c, n_u), 1) + n_g    # stacked ids N_g..

    def gather(idx):  # idx: [C, 1] int32 -> [C, 16]  (x_stacked[idx] via one-hot matmul)
        sel_g = (col_g == idx).astype(jnp.float32)                    # [C, N_g]
        sel_u = (col_u == idx).astype(jnp.float32)                    # [C, N_u]
        return (jnp.dot(sel_g, x_graph, preferred_element_type=jnp.float32)
                + jnp.dot(sel_u, x_unconn, preferred_element_type=jnp.float32))

    feat_a = gather(cand_src)                                          # x_stacked[cand[:,0]]
    feat_b = gather(cand_dst)                                          # x_stacked[cand[:,1]]

    # Linear(32, 64) with W1 split so the [C, 32] concat never materializes.
    h = _selu(jnp.dot(feat_a, w1[:f, :], preferred_element_type=jnp.float32)
              + jnp.dot(feat_b, w1[f:, :], preferred_element_type=jnp.float32)
              + b1)                                                    # [C, 64]

    # Linear(64, 1): VPU multiply + cross-lane reduction instead of a 1-lane MXU pass.
    return jnp.sum(h * w2_row, axis=-1, keepdims=True) + b2            # [C, 1]


# ------------------------------ fused kernels ------------------------------- #

def edge_predictor_graph_kernel(src_ref, dst_ref, cs_ref, cd_ref, xg_ref, xu_ref,
                                fcu_w_ref, fcu_b_ref,
                                c1_wrel_ref, c1_brel_ref, c1_wroot_ref,
                                c2_wrel_ref, c2_brel_ref, c2_wroot_ref,
                                fc1_w_ref, fc1_b_ref, fc2_wrow_ref, fc2_b_ref,
                                out_ref):
    xg = xg_ref[...]                                       # [N_g, 4]
    xu = xu_ref[...]                                       # [N_u, 4]
    n_g = xg.shape[0]
    e = src_ref.shape[0]

    # fc_unconnected: Dropout(identity) + Linear(4, 16)
    x_unconn = (jnp.dot(xu, fcu_w_ref[...], preferred_element_type=jnp.float32)
                + fcu_b_ref[...])                          # [N_u, 16]

    # Sparse message-passing selectors, built once and reused for both layers.
    col_nodes = jax.lax.broadcasted_iota(jnp.int32, (e, n_g), 1)        # [E, N_g]
    row_nodes = jax.lax.broadcasted_iota(jnp.int32, (n_g, e), 0)        # [N_g, E]
    gather_src = (col_nodes == src_ref[...]).astype(jnp.float32)        # [E, N_g]
    scatter_dst = (row_nodes == dst_ref[...]).astype(jnp.float32)       # [N_g, E]

    def neighbor_sum(x):  # sum_{(j->i) in edges} x_j   (== A @ x, without dense A)
        x_src = jnp.dot(gather_src, x, preferred_element_type=jnp.float32)       # [E, F]
        return jnp.dot(scatter_dst, x_src, preferred_element_type=jnp.float32)   # [N_g, F]

    # GraphConv(4, 8) + SELU : W_rel @ aggr + b_rel + W_root @ x
    h = _selu(jnp.dot(neighbor_sum(xg), c1_wrel_ref[...], preferred_element_type=jnp.float32)
              + c1_brel_ref[...]
              + jnp.dot(xg, c1_wroot_ref[...], preferred_element_type=jnp.float32))   # [N_g, 8]

    # GraphConv(8, 16) + SELU
    x_graph = _selu(jnp.dot(neighbor_sum(h), c2_wrel_ref[...], preferred_element_type=jnp.float32)
                    + c2_brel_ref[...]
                    + jnp.dot(h, c2_wroot_ref[...], preferred_element_type=jnp.float32))  # [N_g, 16]

    out_ref[...] = _candidate_head(x_graph, x_unconn, cs_ref[...], cd_ref[...],
                                   fc1_w_ref[...], fc1_b_ref[...],
                                   fc2_wrow_ref[...], fc2_b_ref[...])


def edge_predictor_noedge_kernel(cs_ref, cd_ref, xg_ref, xu_ref,
                                 fcu_w_ref, fcu_b_ref,
                                 fc1_w_ref, fc1_b_ref, fc2_wrow_ref, fc2_b_ref,
                                 out_ref):
    # len(edges) == 0 branch: both node sets go through fc_unconnected.
    fcu_w = fcu_w_ref[...]
    fcu_b = fcu_b_ref[...]
    x_unconn = jnp.dot(xu_ref[...], fcu_w, preferred_element_type=jnp.float32) + fcu_b
    x_graph = jnp.dot(xg_ref[...], fcu_w, preferred_element_type=jnp.float32) + fcu_b
    out_ref[...] = _candidate_head(x_graph, x_unconn, cs_ref[...], cd_ref[...],
                                   fc1_w_ref[...], fc1_b_ref[...],
                                   fc2_wrow_ref[...], fc2_b_ref[...])


# ------------------------------- parameters -------------------------------- #

def _uniform(key, shape, fan_in):
    bound = 1.0 / jnp.sqrt(jnp.float32(fan_in))
    return jax.random.uniform(key, shape, jnp.float32, -bound, bound)


def init_params(key):
    ks = jax.random.split(key, 12)
    p = {}
    # GraphConv(4, 8): lin_rel (bias), lin_root (no bias); stored as [in, out]
    p["c1_wrel"] = _uniform(ks[0], (4, 8), 4)
    p["c1_brel"] = _uniform(ks[1], (1, 8), 4)
    p["c1_wroot"] = _uniform(ks[2], (4, 8), 4)
    # GraphConv(8, 16)
    p["c2_wrel"] = _uniform(ks[3], (8, 16), 8)
    p["c2_brel"] = _uniform(ks[4], (1, 16), 8)
    p["c2_wroot"] = _uniform(ks[5], (8, 16), 8)
    # fc_unconnected: Linear(4, 16)
    p["fcu_w"] = _uniform(ks[6], (4, 16), 4)
    p["fcu_b"] = _uniform(ks[7], (1, 16), 4)
    # fc head: Linear(32, 64) -> SELU -> Linear(64, 1)
    p["fc1_w"] = _uniform(ks[8], (32, 64), 32)
    p["fc1_b"] = _uniform(ks[9], (1, 64), 32)
    p["fc2_w_row"] = _uniform(ks[10], (1, 64), 64)   # Linear(64,1) weight stored as a row
    p["fc2_b"] = _uniform(ks[11], (1, 1), 64)
    return p


# ------------------------------ forward pass ------------------------------- #

def edge_predictor_forward(params, x_u, x_g, candidates, edges):
    c = candidates.shape[0]
    cand_src = candidates[:, 0:1].astype(jnp.int32)               # [C, 1]
    cand_dst = candidates[:, 1:2].astype(jnp.int32)               # [C, 1]
    out_shape = jax.ShapeDtypeStruct((c, 1), jnp.float32)
    head_args = (params["fc1_w"], params["fc1_b"], params["fc2_w_row"], params["fc2_b"])

    if edges.shape[0] == 0:   # trace-time check, mirrors `if len(edges) == 0`
        out = pl.pallas_call(
            edge_predictor_noedge_kernel,
            out_shape=out_shape,
            in_specs=_vmem_specs(10),
            out_specs=pl.BlockSpec(memory_space=pltpu.MemorySpace.VMEM),
        )(cand_src, cand_dst, x_g, x_u,
          params["fcu_w"], params["fcu_b"], *head_args)
    else:
        src_col = edges[:, 0:1].astype(jnp.int32)                 # [E, 1]
        dst_row = edges[:, 1].reshape(1, -1).astype(jnp.int32)    # [1, E]
        out = pl.pallas_call(
            edge_predictor_graph_kernel,
            out_shape=out_shape,
            in_specs=_vmem_specs(18),
            out_specs=pl.BlockSpec(memory_space=pltpu.MemorySpace.VMEM),
        )(src_col, dst_row, cand_src, cand_dst, x_g, x_u,
          params["fcu_w"], params["fcu_b"],
          params["c1_wrel"], params["c1_brel"], params["c1_wroot"],
          params["c2_wrel"], params["c2_brel"], params["c2_wroot"],
          *head_args)

    # torch.squeeze semantics: removes all size-1 dims (scalar when C == 1).
    return jnp.squeeze(out)


# ---------------------------------- main ----------------------------------- #

if __name__ == "__main__":
    key = jax.random.PRNGKey(0)
    k_par, k_xu, k_xg, k_e, k_c = jax.random.split(key, 5)

    params = init_params(k_par)

    N_g, N_u, E, C = 8, 8, 16, 8
    x_u = jax.random.normal(k_xu, (N_u, 4), jnp.float32)
    x_g = jax.random.normal(k_xg, (N_g, 4), jnp.float32)
    edges = jax.random.randint(k_e, (E, 2), 0, N_g, jnp.int32)
    candidates = jax.random.randint(k_c, (C, 2), 0, N_g + N_u, jnp.int32)

    out = edge_predictor_forward(params, x_u, x_g, candidates, edges)
    out = jax.block_until_ready(out)
    assert out.shape == (C,), out.shape
    print("KERNEL_OK")
</pallas_src>

<mosaic_0001>
module attributes {stable_mosaic.version = 11 : i64} {
  func.func @edge_predictor_graph_kernel(%arg0: memref<16x1xi32, #tpu.memory_space<vmem>>, %arg1: memref<1x16xi32, #tpu.memory_space<vmem>>, %arg2: memref<8x1xi32, #tpu.memory_space<vmem>>, %arg3: memref<8x1xi32, #tpu.memory_space<vmem>>, %arg4: memref<8x4xf32, #tpu.memory_space<vmem>>, %arg5: memref<8x4xf32, #tpu.memory_space<vmem>>, %arg6: memref<4x16xf32, #tpu.memory_space<vmem>>, %arg7: memref<1x16xf32, #tpu.memory_space<vmem>>, %arg8: memref<4x8xf32, #tpu.memory_space<vmem>>, %arg9: memref<1x8xf32, #tpu.memory_space<vmem>>, %arg10: memref<4x8xf32, #tpu.memory_space<vmem>>, %arg11: memref<8x16xf32, #tpu.memory_space<vmem>>, %arg12: memref<1x16xf32, #tpu.memory_space<vmem>>, %arg13: memref<8x16xf32, #tpu.memory_space<vmem>>, %arg14: memref<32x64xf32, #tpu.memory_space<vmem>>, %arg15: memref<1x64xf32, #tpu.memory_space<vmem>>, %arg16: memref<1x64xf32, #tpu.memory_space<vmem>>, %arg17: memref<1x1xf32, #tpu.memory_space<vmem>>, %arg18: memref<8x1xf32, #tpu.memory_space<vmem>>) attributes {dimension_semantics = [], scalar_prefetch = 0 : i64, scratch_operands = 0 : i64, tpu.core_type = #tpu.core_type<tc>} {
    %c0 = arith.constant 0 : index
    %c0_0 = arith.constant 0 : index
    %0 = vector.load %arg4[%c0, %c0_0] : memref<8x4xf32, #tpu.memory_space<vmem>>, vector<8x4xf32>
    %c0_1 = arith.constant 0 : index
    %c0_2 = arith.constant 0 : index
    %1 = vector.load %arg5[%c0_1, %c0_2] : memref<8x4xf32, #tpu.memory_space<vmem>>, vector<8x4xf32>
    %c0_3 = arith.constant 0 : index
    %c0_4 = arith.constant 0 : index
    %2 = vector.load %arg6[%c0_3, %c0_4] : memref<4x16xf32, #tpu.memory_space<vmem>>, vector<4x16xf32>
    %cst = arith.constant dense<0.000000e+00> : vector<8x16xf32>
    %3 = tpu.matmul %1, %2, %cst {dimension_numbers = #tpu.dot_dimension_numbers<[1], [0], [0], [1], [0, 0, 1, 1], [], []>} : vector<8x4xf32>, vector<4x16xf32>, vector<8x16xf32> -> vector<8x16xf32>
    %c0_5 = arith.constant 0 : index
    %c0_6 = arith.constant 0 : index
    %4 = vector.load %arg7[%c0_5, %c0_6] : memref<1x16xf32, #tpu.memory_space<vmem>>, vector<1x16xf32>
    %5 = vector.broadcast %4 : vector<1x16xf32> to vector<8x16xf32>
    %6 = arith.addf %3, %5 : vector<8x16xf32>
    %7 = tpu.iota {dimensions = array<i32: 1>} : vector<16x8xi32>
    %8 = tpu.iota {dimensions = array<i32: 0>} : vector<8x16xi32>
    %c0_7 = arith.constant 0 : index
    %c0_8 = arith.constant 0 : index
    %9 = vector.load %arg0[%c0_7, %c0_8] : memref<16x1xi32, #tpu.memory_space<vmem>>, vector<16x1xi32>
    %10 = vector.broadcast %9 : vector<16x1xi32> to vector<16x8xi32>
    %11 = arith.cmpi eq, %7, %10 : vector<16x8xi32>
    %12 = arith.extui %11 : vector<16x8xi1> to vector<16x8xi32>
    %13 = arith.sitofp %12 : vector<16x8xi32> to vector<16x8xf32>
    %c0_9 = arith.constant 0 : index
    %c0_10 = arith.constant 0 : index
    %14 = vector.load %arg1[%c0_9, %c0_10] : memref<1x16xi32, #tpu.memory_space<vmem>>, vector<1x16xi32>
    %15 = vector.broadcast %14 : vector<1x16xi32> to vector<8x16xi32>
    %16 = arith.cmpi eq, %8, %15 : vector<8x16xi32>
    %17 = arith.extui %16 : vector<8x16xi1> to vector<8x16xi32>
    %18 = arith.sitofp %17 : vector<8x16xi32> to vector<8x16xf32>
    %cst_11 = arith.constant dense<0.000000e+00> : vector<16x4xf32>
    %19 = tpu.matmul %13, %0, %cst_11 {dimension_numbers = #tpu.dot_dimension_numbers<[1], [0], [0], [1], [0, 0, 1, 1], [], []>} : vector<16x8xf32>, vector<8x4xf32>, vector<16x4xf32> -> vector<16x4xf32>
    %cst_12 = arith.constant dense<0.000000e+00> : vector<8x4xf32>
    %20 = tpu.matmul %18, %19, %cst_12 {dimension_numbers = #tpu.dot_dimension_numbers<[1], [0], [0], [1], [0, 0, 1, 1], [], []>} : vector<8x16xf32>, vector<16x4xf32>, vector<8x4xf32> -> vector<8x4xf32>
    %c0_13 = arith.constant 0 : index
    %c0_14 = arith.constant 0 : index
    %21 = vector.load %arg8[%c0_13, %c0_14] : memref<4x8xf32, #tpu.memory_space<vmem>>, vector<4x8xf32>
    %cst_15 = arith.constant dense<0.000000e+00> : vector<8x8xf32>
    %22 = tpu.matmul %20, %21, %cst_15 {dimension_numbers = #tpu.dot_dimension_numbers<[1], [0], [0], [1], [0, 0, 1, 1], [], []>} : vector<8x4xf32>, vector<4x8xf32>, vector<8x8xf32> -> vector<8x8xf32>
    %c0_16 = arith.constant 0 : index
    %c0_17 = arith.constant 0 : index
    %23 = vector.load %arg9[%c0_16, %c0_17] : memref<1x8xf32, #tpu.memory_space<vmem>>, vector<1x8xf32>
    %24 = vector.broadcast %23 : vector<1x8xf32> to vector<8x8xf32>
    %25 = arith.addf %22, %24 : vector<8x8xf32>
    %c0_18 = arith.constant 0 : index
    %c0_19 = arith.constant 0 : index
    %26 = vector.load %arg10[%c0_18, %c0_19] : memref<4x8xf32, #tpu.memory_space<vmem>>, vector<4x8xf32>
    %cst_20 = arith.constant dense<0.000000e+00> : vector<8x8xf32>
    %27 = tpu.matmul %0, %26, %cst_20 {dimension_numbers = #tpu.dot_dimension_numbers<[1], [0], [0], [1], [0, 0, 1, 1], [], []>} : vector<8x4xf32>, vector<4x8xf32>, vector<8x8xf32> -> vector<8x8xf32>
    %28 = arith.addf %25, %27 : vector<8x8xf32>
    %cst_21 = arith.constant 0.000000e+00 : f32
    %29 = vector.broadcast %cst_21 : f32 to vector<8x8xf32>
    %30 = arith.minimumf %28, %29 : vector<8x8xf32>
    %31 = math.exp %30 : vector<8x8xf32>
    %cst_22 = arith.constant 1.000000e+00 : f32
    %32 = vector.broadcast %cst_22 : f32 to vector<8x8xf32>
    %33 = arith.subf %31, %32 : vector<8x8xf32>
    %cst_23 = arith.constant 1.67326319 : f32
    %34 = vector.broadcast %cst_23 : f32 to vector<8x8xf32>
    %35 = arith.mulf %34, %33 : vector<8x8xf32>
    %cst_24 = arith.constant 0.000000e+00 : f32
    %36 = vector.broadcast %cst_24 : f32 to vector<8x8xf32>
    %37 = arith.cmpf ogt, %28, %36 : vector<8x8xf32>
    %38 = arith.select %37, %28, %35 : vector<8x8xi1>, vector<8x8xf32>
    %cst_25 = arith.constant 1.05070102 : f32
    %39 = vector.broadcast %cst_25 : f32 to vector<8x8xf32>
    %40 = arith.mulf %39, %38 : vector<8x8xf32>
    %cst_26 = arith.constant dense<0.000000e+00> : vector<16x8xf32>
    %41 = tpu.matmul %13, %40, %cst_26 {dimension_numbers = #tpu.dot_dimension_numbers<[1], [0], [0], [1], [0, 0, 1, 1], [], []>} : vector<16x8xf32>, vector<8x8xf32>, vector<16x8xf32> -> vector<16x8xf32>
    %cst_27 = arith.constant dense<0.000000e+00> : vector<8x8xf32>
    %42 = tpu.matmul %18, %41, %cst_27 {dimension_numbers = #tpu.dot_dimension_numbers<[1], [0], [0], [1], [0, 0, 1, 1], [], []>} : vector<8x16xf32>, vector<16x8xf32>, vector<8x8xf32> -> vector<8x8xf32>
    %c0_28 = arith.constant 0 : index
    %c0_29 = arith.constant 0 : index
    %43 = vector.load %arg11[%c0_28, %c0_29] : memref<8x16xf32, #tpu.memory_space<vmem>>, vector<8x16xf32>
    %cst_30 = arith.constant dense<0.000000e+00> : vector<8x16xf32>
    %44 = tpu.matmul %42, %43, %cst_30 {dimension_numbers = #tpu.dot_dimension_numbers<[1], [0], [0], [1], [0, 0, 1, 1], [], []>} : vector<8x8xf32>, vector<8x16xf32>, vector<8x16xf32> -> vector<8x16xf32>
    %c0_31 = arith.constant 0 : index
    %c0_32 = arith.constant 0 : index
    %45 = vector.load %arg12[%c0_31, %c0_32] : memref<1x16xf32, #tpu.memory_space<vmem>>, vector<1x16xf32>
    %46 = vector.broadcast %45 : vector<1x16xf32> to vector<8x16xf32>
    %47 = arith.addf %44, %46 : vector<8x16xf32>
    %c0_33 = arith.constant 0 : index
    %c0_34 = arith.constant 0 : index
    %48 = vector.load %arg13[%c0_33, %c0_34] : memref<8x16xf32, #tpu.memory_space<vmem>>, vector<8x16xf32>
    %cst_35 = arith.constant dense<0.000000e+00> : vector<8x16xf32>
    %49 = tpu.matmul %40, %48, %cst_35 {dimension_numbers = #tpu.dot_dimension_numbers<[1], [0], [0], [1], [0, 0, 1, 1], [], []>} : vector<8x8xf32>, vector<8x16xf32>, vector<8x16xf32> -> vector<8x16xf32>
    %50 = arith.addf %47, %49 : vector<8x16xf32>
    %cst_36 = arith.constant 0.000000e+00 : f32
    %51 = vector.broadcast %cst_36 : f32 to vector<8x16xf32>
    %52 = arith.minimumf %50, %51 : vector<8x16xf32>
    %53 = math.exp %52 : vector<8x16xf32>
    %cst_37 = arith.constant 1.000000e+00 : f32
    %54 = vector.broadcast %cst_37 : f32 to vector<8x16xf32>
    %55 = arith.subf %53, %54 : vector<8x16xf32>
    %cst_38 = arith.constant 1.67326319 : f32
    %56 = vector.broadcast %cst_38 : f32 to vector<8x16xf32>
    %57 = arith.mulf %56, %55 : vector<8x16xf32>
    %cst_39 = arith.constant 0.000000e+00 : f32
    %58 = vector.broadcast %cst_39 : f32 to vector<8x16xf32>
    %59 = arith.cmpf ogt, %50, %58 : vector<8x16xf32>
    %60 = arith.select %59, %50, %57 : vector<8x16xi1>, vector<8x16xf32>
    %cst_40 = arith.constant 1.05070102 : f32
    %61 = vector.broadcast %cst_40 : f32 to vector<8x16xf32>
    %62 = arith.mulf %61, %60 : vector<8x16xf32>
    %c0_41 = arith.constant 0 : index
    %c0_42 = arith.constant 0 : index
    %63 = vector.load %arg2[%c0_41, %c0_42] : memref<8x1xi32, #tpu.memory_space<vmem>>, vector<8x1xi32>
    %c0_43 = arith.constant 0 : index
    %c0_44 = arith.constant 0 : index
    %64 = vector.load %arg3[%c0_43, %c0_44] : memref<8x1xi32, #tpu.memory_space<vmem>>, vector<8x1xi32>
    %c0_45 = arith.constant 0 : index
    %c0_46 = arith.constant 0 : index
    %65 = vector.load %arg14[%c0_45, %c0_46] : memref<32x64xf32, #tpu.memory_space<vmem>>, vector<32x64xf32>
    %c0_47 = arith.constant 0 : index
    %c0_48 = arith.constant 0 : index
    %66 = vector.load %arg15[%c0_47, %c0_48] : memref<1x64xf32, #tpu.memory_space<vmem>>, vector<1x64xf32>
    %c0_49 = arith.constant 0 : index
    %c0_50 = arith.constant 0 : index
    %67 = vector.load %arg16[%c0_49, %c0_50] : memref<1x64xf32, #tpu.memory_space<vmem>>, vector<1x64xf32>
    %c0_51 = arith.constant 0 : index
    %c0_52 = arith.constant 0 : index
    %68 = vector.load %arg17[%c0_51, %c0_52] : memref<1x1xf32, #tpu.memory_space<vmem>>, vector<1x1xf32>
    %69 = tpu.iota {dimensions = array<i32: 1>} : vector<8x8xi32>
    %70 = tpu.iota {dimensions = array<i32: 1>} : vector<8x8xi32>
    %c8_i32 = arith.constant 8 : i32
    %71 = vector.broadcast %c8_i32 : i32 to vector<8x8xi32>
    %72 = arith.addi %70, %71 : vector<8x8xi32>
    %73 = vector.broadcast %63 : vector<8x1xi32> to vector<8x8xi32>
    %74 = arith.cmpi eq, %69, %73 : vector<8x8xi32>
    %75 = arith.extui %74 : vector<8x8xi1> to vector<8x8xi32>
    %76 = arith.sitofp %75 : vector<8x8xi32> to vector<8x8xf32>
    %77 = vector.broadcast %63 : vector<8x1xi32> to vector<8x8xi32>
    %78 = arith.cmpi eq, %72, %77 : vector<8x8xi32>
    %79 = arith.extui %78 : vector<8x8xi1> to vector<8x8xi32>
    %80 = arith.sitofp %79 : vector<8x8xi32> to vector<8x8xf32>
    %cst_53 = arith.constant dense<0.000000e+00> : vector<8x16xf32>
    %81 = tpu.matmul %76, %62, %cst_53 {dimension_numbers = #tpu.dot_dimension_numbers<[1], [0], [0], [1], [0, 0, 1, 1], [], []>} : vector<8x8xf32>, vector<8x16xf32>, vector<8x16xf32> -> vector<8x16xf32>
    %cst_54 = arith.constant dense<0.000000e+00> : vector<8x16xf32>
    %82 = tpu.matmul %80, %6, %cst_54 {dimension_numbers = #tpu.dot_dimension_numbers<[1], [0], [0], [1], [0, 0, 1, 1], [], []>} : vector<8x8xf32>, vector<8x16xf32>, vector<8x16xf32> -> vector<8x16xf32>
    %83 = arith.addf %81, %82 : vector<8x16xf32>
    %84 = vector.broadcast %64 : vector<8x1xi32> to vector<8x8xi32>
    %85 = arith.cmpi eq, %69, %84 : vector<8x8xi32>
    %86 = arith.extui %85 : vector<8x8xi1> to vector<8x8xi32>
    %87 = arith.sitofp %86 : vector<8x8xi32> to vector<8x8xf32>
    %88 = vector.broadcast %64 : vector<8x1xi32> to vector<8x8xi32>
    %89 = arith.cmpi eq, %72, %88 : vector<8x8xi32>
    %90 = arith.extui %89 : vector<8x8xi1> to vector<8x8xi32>
    %91 = arith.sitofp %90 : vector<8x8xi32> to vector<8x8xf32>
    %cst_55 = arith.constant dense<0.000000e+00> : vector<8x16xf32>
    %92 = tpu.matmul %87, %62, %cst_55 {dimension_numbers = #tpu.dot_dimension_numbers<[1], [0], [0], [1], [0, 0, 1, 1], [], []>} : vector<8x8xf32>, vector<8x16xf32>, vector<8x16xf32> -> vector<8x16xf32>
    %cst_56 = arith.constant dense<0.000000e+00> : vector<8x16xf32>
    %93 = tpu.matmul %91, %6, %cst_56 {dimension_numbers = #tpu.dot_dimension_numbers<[1], [0], [0], [1], [0, 0, 1, 1], [], []>} : vector<8x8xf32>, vector<8x16xf32>, vector<8x16xf32> -> vector<8x16xf32>
    %94 = arith.addf %92, %93 : vector<8x16xf32>
    %95 = vector.extract_strided_slice %65 {offsets = [0, 0], sizes = [16, 64], strides = [1, 1]} : vector<32x64xf32> to vector<16x64xf32>
    %cst_57 = arith.constant dense<0.000000e+00> : vector<8x64xf32>
    %96 = tpu.matmul %83, %95, %cst_57 {dimension_numbers = #tpu.dot_dimension_numbers<[1], [0], [0], [1], [0, 0, 1, 1], [], []>} : vector<8x16xf32>, vector<16x64xf32>, vector<8x64xf32> -> vector<8x64xf32>
    %97 = vector.extract_strided_slice %65 {offsets = [16, 0], sizes = [16, 64], strides = [1, 1]} : vector<32x64xf32> to vector<16x64xf32>
    %cst_58 = arith.constant dense<0.000000e+00> : vector<8x64xf32>
    %98 = tpu.matmul %94, %97, %cst_58 {dimension_numbers = #tpu.dot_dimension_numbers<[1], [0], [0], [1], [0, 0, 1, 1], [], []>} : vector<8x16xf32>, vector<16x64xf32>, vector<8x64xf32> -> vector<8x64xf32>
    %99 = arith.addf %96, %98 : vector<8x64xf32>
    %100 = vector.broadcast %66 : vector<1x64xf32> to vector<8x64xf32>
    %101 = arith.addf %99, %100 : vector<8x64xf32>
    %cst_59 = arith.constant 0.000000e+00 : f32
    %102 = vector.broadcast %cst_59 : f32 to vector<8x64xf32>
    %103 = arith.minimumf %101, %102 : vector<8x64xf32>
    %104 = math.exp %103 : vector<8x64xf32>
    %cst_60 = arith.constant 1.000000e+00 : f32
    %105 = vector.broadcast %cst_60 : f32 to vector<8x64xf32>
    %106 = arith.subf %104, %105 : vector<8x64xf32>
    %cst_61 = arith.constant 1.67326319 : f32
    %107 = vector.broadcast %cst_61 : f32 to vector<8x64xf32>
    %108 = arith.mulf %107, %106 : vector<8x64xf32>
    %cst_62 = arith.constant 0.000000e+00 : f32
    %109 = vector.broadcast %cst_62 : f32 to vector<8x64xf32>
    %110 = arith.cmpf ogt, %101, %109 : vector<8x64xf32>
    %111 = arith.select %110, %101, %108 : vector<8x64xi1>, vector<8x64xf32>
    %cst_63 = arith.constant 1.05070102 : f32
    %112 = vector.broadcast %cst_63 : f32 to vector<8x64xf32>
    %113 = arith.mulf %112, %111 : vector<8x64xf32>
    %114 = vector.broadcast %67 : vector<1x64xf32> to vector<8x64xf32>
    %115 = arith.mulf %113, %114 : vector<8x64xf32>
    %cst_64 = arith.constant dense<0.000000e+00> : vector<8xf32>
    %116 = vector.multi_reduction <add>, %115, %cst_64 [1] : vector<8x64xf32> to vector<8xf32>
    %117 = vector.shape_cast %116 : vector<8xf32> to vector<8x1xf32>
    %118 = vector.broadcast %68 : vector<1x1xf32> to vector<8x1xf32>
    %119 = arith.addf %117, %118 : vector<8x1xf32>
    %c0_65 = arith.constant 0 : index
    %c0_66 = arith.constant 0 : index
    %120 = vector.load %arg18[%c0_65, %c0_66] : memref<8x1xf32, #tpu.memory_space<vmem>>, vector<8x1xf32>
    tpu.vector_store %arg18[%c0_65, %c0_66], %119 {strides = array<i32>} : memref<8x1xf32, #tpu.memory_space<vmem>>, vector<8x1xf32>,
    return
  }
}

</mosaic_0001>

<llo_original>
// kernel: tpu_custom_call.1
$region0: #{tpu_custom_call.1}
  #allocation0 [shape = 'u32[]', space=smem, size = 0x4, offset = 0x4, fixed_abs, tag = 'smem constant byte address 0x4 - core index']
  #allocation1 [shape = 'u32[72,128]{1,0:T(1,128)}', space=vmem, size = 0x9000, scoped, tag = 'internal scratch']
  #allocation2 [shape = 'f32[1,1]{1,0:T(1,128)S(1)}', space=vmem, size = 0x200, scoped, tag = 'scoped memory for tpu_custom_call.1']
  %s0 = inlined_call_operand.vmem [shape: s32[16,1], index: 0, kind: input, shape index: {}]
  %s1 = inlined_call_operand.vmem [shape: s32[1,16], index: 1, kind: input, shape index: {}]
  %s2 = inlined_call_operand.vmem [shape: s32[8,1], index: 2, kind: input, shape index: {}]
  %s3 = inlined_call_operand.vmem [shape: s32[8,1], index: 3, kind: input, shape index: {}]
  %s4 = inlined_call_operand.vmem [shape: f32[8,4], index: 4, kind: input, shape index: {}]
  %s5 = inlined_call_operand.vmem [shape: f32[8,4], index: 5, kind: input, shape index: {}]
  %s6 = inlined_call_operand.vmem [shape: f32[4,16], index: 6, kind: input, shape index: {}]
  %s7 = inlined_call_operand.vmem [shape: f32[1,16], index: 7, kind: input, shape index: {}]
  %s8 = inlined_call_operand.vmem [shape: f32[4,8], index: 8, kind: input, shape index: {}]
  %s9 = inlined_call_operand.vmem [shape: f32[1,8], index: 9, kind: input, shape index: {}]
  %s10 = inlined_call_operand.vmem [shape: f32[4,8], index: 10, kind: input, shape index: {}]
  %s11 = inlined_call_operand.vmem [shape: f32[8,16], index: 11, kind: input, shape index: {}]
  %s12 = inlined_call_operand.vmem [shape: f32[1,16], index: 12, kind: input, shape index: {}]
  %s13 = inlined_call_operand.vmem [shape: f32[8,16], index: 13, kind: input, shape index: {}]
  %s14 = inlined_call_operand.hbm [shape: f32[32,64], index: 14, kind: input, shape index: {}]
  %s15 = inlined_call_operand.vmem [shape: f32[1,64], index: 15, kind: input, shape index: {}]
  %s16 = inlined_call_operand.vmem [shape: f32[1,64], index: 16, kind: input, shape index: {}]
  %s17 = inlined_call_operand.<no memory space> [shape: f32[1,1], index: 17, kind: input, shape index: {}]
  %s18 = inlined_call_operand.vmem [shape: f32[8,1], index: 18, kind: output, shape index: {}]
  %s19 = sld [smem:[#allocation0]]
  $region86: #{tpu_custom_call.1} parent=0
    _
  %s21 = ssub.s32 1, %s19
  %s22 = scalar_select 0, %s21, %s19
  %v23 = vstv %s17
  %24 = vst [vmem:[#allocation2] sm:$0x1] %v23
  $region1: #{tpu_custom_call.1} parent=0
    #allocation3 [shape = 'u8[16384]{0}', space=vmem, size = 0x4000, scoped, tag = 'input window, operand 14, single buffered']
    #allocation4 [shape = 's32[1]{0}', space=sflag, size = 0x4, scoped, tag = 'scoped memory for tpu_custom_call.1']
    %25 = vsyncpa [#allocation4], 0
    // Predicated region
    $region2: #{tpu_custom_call.1} parent=1 // pred_check
      _
    $region3: #{tpu_custom_call.1} parent=1 // pred_check_branch
      %27 = sbr.rel (0) target = $region5
    $region4: #{tpu_custom_call.1} parent=1 // pred_region
      _
    $region5: #{tpu_custom_call.1} parent=1 // pred_fallthru
      _
    // Predicated region
    $region6: #{tpu_custom_call.1} parent=1 // pred_check
      _
    $region7: #{tpu_custom_call.1} parent=1 // pred_check_branch
      %29 = sbr.rel (0) target = $region9
    $region8: #{tpu_custom_call.1} parent=1 // pred_region
      _
    $region9: #{tpu_custom_call.1} parent=1 // pred_fallthru
      _
    // Predicated region
    $region10: #{tpu_custom_call.1} parent=1 // pred_check
      _
    $region11: #{tpu_custom_call.1} parent=1 // pred_check_branch
      %31 = sbr.rel (0) target = $region13
    $region12: #{tpu_custom_call.1} parent=1 // pred_region
      _
    $region13: #{tpu_custom_call.1} parent=1 // pred_fallthru
      _
    // Predicated region
    $region14: #{tpu_custom_call.1} parent=1 // pred_check
      _
    $region15: #{tpu_custom_call.1} parent=1 // pred_check_branch
      %33 = sbr.rel (0) target = $region17
    $region16: #{tpu_custom_call.1} parent=1 // pred_region
      _
    $region17: #{tpu_custom_call.1} parent=1 // pred_fallthru
      _
    // Predicated region
    $region18: #{tpu_custom_call.1} parent=1 // pred_check
      _
    $region19: #{tpu_custom_call.1} parent=1 // pred_check_branch
      %35 = sbr.rel (0) target = $region21
    $region20: #{tpu_custom_call.1} parent=1 // pred_region
      _
    $region21: #{tpu_custom_call.1} parent=1 // pred_fallthru
      _
    // Predicated region
    $region22: #{tpu_custom_call.1} parent=1 // pred_check
      _
    $region23: #{tpu_custom_call.1} parent=1 // pred_check_branch
      %37 = sbr.rel (0) target = $region25
    $region24: #{tpu_custom_call.1} parent=1 // pred_region
      _
    $region25: #{tpu_custom_call.1} parent=1 // pred_fallthru
      _
    // Predicated region
    $region26: #{tpu_custom_call.1} parent=1 // pred_check
      _
    $region27: #{tpu_custom_call.1} parent=1 // pred_check_branch
      %39 = sbr.rel (0) target = $region29
    $region28: #{tpu_custom_call.1} parent=1 // pred_region
      _
    $region29: #{tpu_custom_call.1} parent=1 // pred_fallthru
      _
    // Predicated region
    $region30: #{tpu_custom_call.1} parent=1 // pred_check
      _
    $region31: #{tpu_custom_call.1} parent=1 // pred_check_branch
      %41 = sbr.rel (0) target = $region33
    $region32: #{tpu_custom_call.1} parent=1 // pred_region
      _
    $region33: #{tpu_custom_call.1} parent=1 // pred_fallthru
      _
    // Predicated region
    $region34: #{tpu_custom_call.1} parent=1 // pred_check
      _
    $region35: #{tpu_custom_call.1} parent=1 // pred_check_branch
      %43 = sbr.rel (0) target = $region37
    $region36: #{tpu_custom_call.1} parent=1 // pred_region
      _
    $region37: #{tpu_custom_call.1} parent=1 // pred_fallthru
      _
    // Predicated region
    $region38: #{tpu_custom_call.1} parent=1 // pred_check
      _
    $region39: #{tpu_custom_call.1} parent=1 // pred_check_branch
      %45 = sbr.rel (0) target = $region41
    $region40: #{tpu_custom_call.1} parent=1 // pred_region
      _
    $region41: #{tpu_custom_call.1} parent=1 // pred_fallthru
      _
    // Predicated region
    $region42: #{tpu_custom_call.1} parent=1 // pred_check
      _
    $region43: #{tpu_custom_call.1} parent=1 // pred_check_branch
      %47 = sbr.rel (0) target = $region45
    $region44: #{tpu_custom_call.1} parent=1 // pred_region
      _
    $region45: #{tpu_custom_call.1} parent=1 // pred_fallthru
      _
    // Predicated region
    $region46: #{tpu_custom_call.1} parent=1 // pred_check
      _
    $region47: #{tpu_custom_call.1} parent=1 // pred_check_branch
      %49 = sbr.rel (0) target = $region49
    $region48: #{tpu_custom_call.1} parent=1 // pred_region
      _
    $region49: #{tpu_custom_call.1} parent=1 // pred_fallthru
      _
    // Predicated region
    $region50: #{tpu_custom_call.1} parent=1 // pred_check
      _
    $region51: #{tpu_custom_call.1} parent=1 // pred_check_branch
      %51 = sbr.rel (0) target = $region53
    $region52: #{tpu_custom_call.1} parent=1 // pred_region
      _
    $region53: #{tpu_custom_call.1} parent=1 // pred_fallthru
      _
    // Predicated region
    $region54: #{tpu_custom_call.1} parent=1 // pred_check
      _
    $region55: #{tpu_custom_call.1} parent=1 // pred_check_branch
      %53 = sbr.rel (0) target = $region57
    $region56: #{tpu_custom_call.1} parent=1 // pred_region
      _
    $region57: #{tpu_custom_call.1} parent=1 // pred_fallthru
      _
    // Predicated region
    $region58: #{tpu_custom_call.1} parent=1 // pred_check
      _
    $region59: #{tpu_custom_call.1} parent=1 // pred_check_branch
      %55 = sbr.rel (0) target = $region61
    $region60: #{tpu_custom_call.1} parent=1 // pred_region
      %57 = vsyncadd [#allocation4], 0
      %s58 = sshll.u32 %s14, 4
      %s59 = int_to_ptr.hbm [resolvable:$true] %s58
      %s60 = sshll.u32 [#allocation3], 4
      %s61 = int_to_ptr.vmem [resolvable:$true] %s60
      %66 = dma.hbm_to_vmem [thread:$0]  %s59, 512, %s61, [#allocation4], 128, 128, 8
    $region61: #{tpu_custom_call.1} parent=1 // pred_fallthru
      _
    // Predicated region
    $region62: #{tpu_custom_call.1} parent=1 // pred_check
      _
    $region63: #{tpu_custom_call.1} parent=1 // pred_check_branch
      %68 = sbr.rel (0) target = $region65
    $region64: #{tpu_custom_call.1} parent=1 // pred_region
      _
    $region65: #{tpu_custom_call.1} parent=1 // pred_fallthru
      _
    // Predicated region
    $region66: #{tpu_custom_call.1} parent=1 // pred_check
      _
    $region67: #{tpu_custom_call.1} parent=1 // pred_check_branch
      %70 = sbr.rel (0) target = $region69
    $region68: #{tpu_custom_call.1} parent=1 // pred_region
      _
    $region69: #{tpu_custom_call.1} parent=1 // pred_fallthru
      _
    // Predicated region
    $region70: #{tpu_custom_call.1} parent=1 // pred_check
      _
    $region71: #{tpu_custom_call.1} parent=1 // pred_check_branch
      %72 = sbr.rel (0) target = $region73
    $region72: #{tpu_custom_call.1} parent=1 // pred_region
      _
    $region73: #{tpu_custom_call.1} parent=1 // pred_fallthru
      _
    // Predicated region
    $region74: #{tpu_custom_call.1} parent=1 // pred_check
      _
    $region75: #{tpu_custom_call.1} parent=1 // pred_check_branch
      %74 = sbr.rel (0) target = $region77
    $region76: #{tpu_custom_call.1} parent=1 // pred_region
      %76 = dma.done [#allocation4], 512
    $region77: #{tpu_custom_call.1} parent=1 // pred_fallthru
      _
    %v77 = vld [vmem:[%s4] sm:$0xff]
    %v78 = vld [vmem:[%s5] sm:$0xff]
    %v79 = vld [vmem:[%s6] sm:$0xf]
    %v80 = vld [vmem:[%s7] sm:$0x1]
    %v82 = vperm.slane %v80, 0
    %vm84 = vcmask 31744
    %v86 = vsel %vm84, %v78, 0
    %vm88 = vcmask 1043456
    %v90 = vsel %vm88, %v79, 0
    %92 = vmatpush.msra.mxu0 0.0
    %93 = vmatpush.msra.mxu0 0.0
    %94 = vmatpush.msra.mxu0 0.0
    %95 = vmatpush.msra.mxu0 0.0
    %96 = vmatpush.msra.mxu0 0.0
    %97 = vmatpush.msra.mxu0 0.0
    %98 = vmatpush.msra.mxu0 0.0
    %99 = vmatpush.msra.mxu0 0.0
    %100 = vmatpush.msra.mxu0 0.0
    %101 = vmatpush.msra.mxu0 0.0
    %102 = vmatpush.msra.mxu0 0.0
    %103 = vmatpush.msra.mxu0 0.0
    %104 = vmatpush.msra.mxu0 0.0
    %105 = vmatpush.msra.mxu0 0.0
    %106 = vmatpush.msra.mxu0 0.0
    %107 = vmatpush.msra.mxu0 %v90
    %108 = vmatmul.f32.gmra.mxu0 %v86
    %v109 = vpop.f32.mrf.mxu0
    %v110 = vadd.f32 %v82, %v109
    %111 = vdwg.mxu0
    %v112 = vlaneseq
    %v113 = vand.u32 %v112, 127
    %v114 = vlaneseq
    %v115 = vshrl.u32 %v114, 7
    %v116 = vld [vmem:[%s0] sm:$0xff]
    %v117 = vld [vmem:[%s0 + $0x8] sm:$0xff]
    %118 = vset.pattern.permute.xlu0 0
    %119 = vperm.xlu0 %118, %v116
    %v120 = vpop.permute.xlu0 %119
    %121 = vset.pattern.permute.xlu0 0
    %122 = vperm.xlu0 %121, %v117
    %v123 = vpop.permute.xlu0 %122
    %vm124 = vcmp.eq.s32.totalorder %v113, %v120
    %vm125 = vcmp.eq.s32.totalorder %v113, %v123
    %v126 = vsel %vm124, 1, 0
    %v127 = vsel %vm125, 1, 0
    %v128 = vcvt.s32.f32 %v126
    %v129 = vcvt.s32.f32 %v127
    %v130 = vld [vmem:[%s1] sm:$0x1]
    %v131 = vperm.slane %v130, 0
    %vm132 = vcmp.eq.s32.totalorder %v115, %v131
    %v133 = vsel %vm132, 1, 0
    %v134 = vcvt.s32.f32 %v133
    %vm135 = vcmask 64512
    %v137 = vsel %vm135, %v128, 0
    %v140 = vsel %vm135, %v129, 0
    %142 = vmatpush.msra.mxu0 0.0
    %143 = vmatpush.msra.mxu0 0.0
    %144 = vmatpush.msra.mxu0 0.0
    %145 = vmatpush.msra.mxu0 0.0
    %146 = vmatpush.msra.mxu0 0.0
    %147 = vmatpush.msra.mxu0 0.0
    %148 = vmatpush.msra.mxu0 0.0
    %149 = vmatpush.msra.mxu0 0.0
    %150 = vmatpush.msra.mxu0 0.0
    %151 = vmatpush.msra.mxu0 0.0
    %152 = vmatpush.msra.mxu0 0.0
    %153 = vmatpush.msra.mxu0 0.0
    %154 = vmatpush.msra.mxu0 0.0
    %155 = vmatpush.msra.mxu0 0.0
    %156 = vmatpush.msra.mxu0 0.0
    %157 = vmatpush.msra.mxu0 %v77
    %158 = vmatmul.f32.gmra.mxu0 %v137
    %v159 = vpop.f32.mrf.mxu0
    %v160 = vadd.f32 0.0, %v159
    %161 = vmatmul.f32.gmra.mxu0 %v140
    %v162 = vpop.f32.mrf.mxu0
    %v163 = vadd.f32 0.0, %v162
    %164 = vdwg.mxu0
    %vm165 = vcmask 130048
    %v167 = vsel %vm165, %v134, 0
    %169 = vmatpush.msra.mxu0 0.0
    %170 = vmatpush.msra.mxu0 0.0
    %171 = vmatpush.msra.mxu0 0.0
    %172 = vmatpush.msra.mxu0 0.0
    %173 = vmatpush.msra.mxu0 0.0
    %174 = vmatpush.msra.mxu0 0.0
    %175 = vmatpush.msra.mxu0 0.0
    %176 = vmatpush.msra.mxu0 0.0
    %177 = vmatpush.msra.mxu0 0.0
    %178 = vmatpush.msra.mxu0 0.0
    %179 = vmatpush.msra.mxu0 0.0
    %180 = vmatpush.msra.mxu0 0.0
    %181 = vmatpush.msra.mxu0 0.0
    %182 = vmatpush.msra.mxu0 0.0
    %183 = vmatpush.msra.mxu0 %v163
    %184 = vmatpush.msra.mxu0 %v160
    %185 = vmatmul.f32.gmra.mxu0 %v167
    %v186 = vpop.f32.mrf.mxu0
    %v187 = vadd.f32 0.0, %v186
    %188 = vdwg.mxu0
    %v189 = vld [vmem:[%s8] sm:$0xf]
    %v190 = vld [vmem:[%s9] sm:$0x1]
    %v192 = vperm.slane %v190, 0
    %v195 = vsel %vm84, %v187, 0
    %v198 = vsel %vm88, %v189, 0
    %200 = vmatpush.msra.mxu0 0.0
    %201 = vmatpush.msra.mxu0 0.0
    %202 = vmatpush.msra.mxu0 0.0
    %203 = vmatpush.msra.mxu0 0.0
    %204 = vmatpush.msra.mxu0 0.0
    %205 = vmatpush.msra.mxu0 0.0
    %206 = vmatpush.msra.mxu0 0.0
    %207 = vmatpush.msra.mxu0 0.0
    %208 = vmatpush.msra.mxu0 0.0
    %209 = vmatpush.msra.mxu0 0.0
    %210 = vmatpush.msra.mxu0 0.0
    %211 = vmatpush.msra.mxu0 0.0
    %212 = vmatpush.msra.mxu0 0.0
    %213 = vmatpush.msra.mxu0 0.0
    %214 = vmatpush.msra.mxu0 0.0
    %215 = vmatpush.msra.mxu0 %v198
    %216 = vmatmul.f32.gmra.mxu0 %v195
    %v217 = vpop.f32.mrf.mxu0
    %v218 = vadd.f32 %v192, %v217
    %219 = vdwg.mxu0
    %v220 = vld [vmem:[%s10] sm:$0xf]
    %v222 = vsel %vm84, %v77, 0
    %v225 = vsel %vm88, %v220, 0
    %227 = vmatpush.msra.mxu0 0.0
    %228 = vmatpush.msra.mxu0 0.0
    %229 = vmatpush.msra.mxu0 0.0
    %230 = vmatpush.msra.mxu0 0.0
    %231 = vmatpush.msra.mxu0 0.0
    %232 = vmatpush.msra.mxu0 0.0
    %233 = vmatpush.msra.mxu0 0.0
    %234 = vmatpush.msra.mxu0 0.0
    %235 = vmatpush.msra.mxu0 0.0
    %236 = vmatpush.msra.mxu0 0.0
    %237 = vmatpush.msra.mxu0 0.0
    %238 = vmatpush.msra.mxu0 0.0
    %239 = vmatpush.msra.mxu0 0.0
    %240 = vmatpush.msra.mxu0 0.0
    %241 = vmatpush.msra.mxu0 0.0
    %242 = vmatpush.msra.mxu0 %v225
    %243 = vmatmul.f32.gmra.mxu0 %v222
    %v244 = vpop.f32.mrf.mxu0
    %v245 = vadd.f32 0.0, %v244
    %246 = vdwg.mxu0
    %v247 = vadd.f32 %v218, %v245
    %v248 = vmin.f32 %v247, 0.0
    %v249 = vmul.f32 %v248, 1.442695
    %v250 = vpow.pop %v249
    %v251 = vsub.f32 %v250, 1.0
    %v252 = vmul.f32 %v251, 1.6732632
    %vm253 = vcmp.gt.f32.partialorder %v247, 0.0
    %v254 = vsel %vm253, %v247, %v252
    %v255 = vmul.f32 %v254, 1.050701
    %256 = vmatpush.msra.mxu0 0.0
    %257 = vmatpush.msra.mxu0 0.0
    %258 = vmatpush.msra.mxu0 0.0
    %259 = vmatpush.msra.mxu0 0.0
    %260 = vmatpush.msra.mxu0 0.0
    %261 = vmatpush.msra.mxu0 0.0
    %262 = vmatpush.msra.mxu0 0.0
    %263 = vmatpush.msra.mxu0 0.0
    %264 = vmatpush.msra.mxu0 0.0
    %265 = vmatpush.msra.mxu0 0.0
    %266 = vmatpush.msra.mxu0 0.0
    %267 = vmatpush.msra.mxu0 0.0
    %268 = vmatpush.msra.mxu0 0.0
    %269 = vmatpush.msra.mxu0 0.0
    %270 = vmatpush.msra.mxu0 0.0
    %271 = vmatpush.msra.mxu0 %v255
    %272 = vmatmul.f32.gmra.mxu0 %v137
    %v273 = vpop.f32.mrf.mxu0
    %v274 = vadd.f32 0.0, %v273
    %275 = vmatmul.f32.gmra.mxu0 %v140
    %v276 = vpop.f32.mrf.mxu0
    %v277 = vadd.f32 0.0, %v276
    %278 = vdwg.mxu0
    %279 = vmatpush.msra.mxu0 0.0
    %280 = vmatpush.msra.mxu0 0.0
    %281 = vmatpush.msra.mxu0 0.0
    %282 = vmatpush.msra.mxu0 0.0
    %283 = vmatpush.msra.mxu0 0.0
    %284 = vmatpush.msra.mxu0 0.0
    %285 = vmatpush.msra.mxu0 0.0
    %286 = vmatpush.msra.mxu0 0.0
    %287 = vmatpush.msra.mxu0 0.0
    %288 = vmatpush.msra.mxu0 0.0
    %289 = vmatpush.msra.mxu0 0.0
    %290 = vmatpush.msra.mxu0 0.0
    %291 = vmatpush.msra.mxu0 0.0
    %292 = vmatpush.msra.mxu0 0.0
    %293 = vmatpush.msra.mxu0 %v277
    %294 = vmatpush.msra.mxu0 %v274
    %295 = vmatmul.f32.gmra.mxu0 %v167
    %v296 = vpop.f32.mrf.mxu0
    %v297 = vadd.f32 0.0, %v296
    %298 = vdwg.mxu0
    %v299 = vld [vmem:[%s11] sm:$0xff]
    %v300 = vld [vmem:[%s12] sm:$0x1]
    %v302 = vperm.slane %v300, 0
    %v305 = vsel %vm135, %v297, 0
    %307 = vmatpush.msra.mxu0 0.0
    %308 = vmatpush.msra.mxu0 0.0
    %309 = vmatpush.msra.mxu0 0.0
    %310 = vmatpush.msra.mxu0 0.0
    %311 = vmatpush.msra.mxu0 0.0
    %312 = vmatpush.msra.mxu0 0.0
    %313 = vmatpush.msra.mxu0 0.0
    %314 = vmatpush.msra.mxu0 0.0
    %315 = vmatpush.msra.mxu0 0.0
    %316 = vmatpush.msra.mxu0 0.0
    %317 = vmatpush.msra.mxu0 0.0
    %318 = vmatpush.msra.mxu0 0.0
    %319 = vmatpush.msra.mxu0 0.0
    %320 = vmatpush.msra.mxu0 0.0
    %321 = vmatpush.msra.mxu0 0.0
    %322 = vmatpush.msra.mxu0 %v299
    %323 = vmatmul.f32.gmra.mxu0 %v305
    %v324 = vpop.f32.mrf.mxu0
    %v325 = vadd.f32 %v302, %v324
    %326 = vdwg.mxu0
    %v327 = vld [vmem:[%s13] sm:$0xff]
    %v329 = vsel %vm135, %v255, 0
    %331 = vmatpush.msra.mxu0 0.0
    %332 = vmatpush.msra.mxu0 0.0
    %333 = vmatpush.msra.mxu0 0.0
    %334 = vmatpush.msra.mxu0 0.0
    %335 = vmatpush.msra.mxu0 0.0
    %336 = vmatpush.msra.mxu0 0.0
    %337 = vmatpush.msra.mxu0 0.0
    %338 = vmatpush.msra.mxu0 0.0
    %339 = vmatpush.msra.mxu0 0.0
    %340 = vmatpush.msra.mxu0 0.0
    %341 = vmatpush.msra.mxu0 0.0
    %342 = vmatpush.msra.mxu0 0.0
    %343 = vmatpush.msra.mxu0 0.0
    %344 = vmatpush.msra.mxu0 0.0
    %345 = vmatpush.msra.mxu0 0.0
    %346 = vmatpush.msra.mxu0 %v327
    %347 = vmatmul.f32.gmra.mxu0 %v329
    %v348 = vpop.f32.mrf.mxu0
    %v349 = vadd.f32 0.0, %v348
    %350 = vdwg.mxu0
    %v351 = vadd.f32 %v325, %v349
    %v352 = vmin.f32 %v351, 0.0
    %v353 = vmul.f32 %v352, 1.442695
    %v354 = vpow.pop %v353
    %v355 = vsub.f32 %v354, 1.0
    %v356 = vmul.f32 %v355, 1.6732632
    %vm357 = vcmp.gt.f32.partialorder %v351, 0.0
    %v358 = vsel %vm357, %v351, %v356
    %v359 = vmul.f32 %v358, 1.050701
    %v360 = vld [vmem:[%s2] sm:$0xff]
    %v361 = vld [vmem:[%s3] sm:$0xff]
    %v362 = vld [vmem:[#allocation3] sm:$0xff]
    %v363 = vld [vmem:[#allocation3 + $0x8] sm:$0xff]
    %v364 = vld [vmem:[#allocation3 + $0x10] sm:$0xff]
    %v365 = vld [vmem:[#allocation3 + $0x18] sm:$0xff]
    %v366 = vld [vmem:[%s15] sm:$0x1]
    %v367 = vld [vmem:[%s16] sm:$0x1]
    %v368 = vld [vmem:[#allocation2] sm:$0x1]
    %v369 = vadd.s32 %v113, 8
    %370 = vset.pattern.permute.xlu0 0
    %371 = vperm.xlu0 %370, %v360
    %v372 = vpop.permute.xlu0 %371
    %vm373 = vcmp.eq.s32.totalorder %v113, %v372
    %v374 = vsel %vm373, 1, 0
    %v375 = vcvt.s32.f32 %v374
    %vm376 = vcmp.eq.s32.totalorder %v369, %v372
    %v377 = vsel %vm376, 1, 0
    %v378 = vcvt.s32.f32 %v377
    %v380 = vsel %vm135, %v378, 0
    %382 = vmatpush.msra.mxu0 0.0
    %383 = vmatpush.msra.mxu0 0.0
    %384 = vmatpush.msra.mxu0 0.0
    %385 = vmatpush.msra.mxu0 0.0
    %386 = vmatpush.msra.mxu0 0.0
    %387 = vmatpush.msra.mxu0 0.0
    %388 = vmatpush.msra.mxu0 0.0
    %389 = vmatpush.msra.mxu0 0.0
    %390 = vmatpush.msra.mxu0 0.0
    %391 = vmatpush.msra.mxu0 0.0
    %392 = vmatpush.msra.mxu0 0.0
    %393 = vmatpush.msra.mxu0 0.0
    %394 = vmatpush.msra.mxu0 0.0
    %395 = vmatpush.msra.mxu0 0.0
    %396 = vmatpush.msra.mxu0 0.0
    %397 = vmatpush.msra.mxu0 %v110
    %398 = vmatmul.f32.gmra.mxu0 %v380
    %v399 = vpop.f32.mrf.mxu0
    %v400 = vadd.f32 0.0, %v399
    %401 = vdwg.mxu0
    %v403 = vsel %vm135, %v375, 0
    %405 = vmatpush.msra.mxu0 0.0
    %406 = vmatpush.msra.mxu0 0.0
    %407 = vmatpush.msra.mxu0 0.0
    %408 = vmatpush.msra.mxu0 0.0
    %409 = vmatpush.msra.mxu0 0.0
    %410 = vmatpush.msra.mxu0 0.0
    %411 = vmatpush.msra.mxu0 0.0
    %412 = vmatpush.msra.mxu0 0.0
    %413 = vmatpush.msra.mxu0 0.0
    %414 = vmatpush.msra.mxu0 0.0
    %415 = vmatpush.msra.mxu0 0.0
    %416 = vmatpush.msra.mxu0 0.0
    %417 = vmatpush.msra.mxu0 0.0
    %418 = vmatpush.msra.mxu0 0.0
    %419 = vmatpush.msra.mxu0 0.0
    %420 = vmatpush.msra.mxu0 %v359
    %421 = vmatmul.f32.gmra.mxu0 %v403
    %v422 = vpop.f32.mrf.mxu0
    %v423 = vadd.f32 %v400, %v422
    %424 = vdwg.mxu0
    %425 = vset.pattern.permute.xlu0 0
    %426 = vperm.xlu0 %425, %v361
    %v427 = vpop.permute.xlu0 %426
    %vm428 = vcmp.eq.s32.totalorder %v113, %v427
    %v429 = vsel %vm428, 1, 0
    %v430 = vcvt.s32.f32 %v429
    %vm431 = vcmp.eq.s32.totalorder %v369, %v427
    %v432 = vsel %vm431, 1, 0
    %v433 = vcvt.s32.f32 %v432
    %v435 = vsel %vm135, %v433, 0
    %437 = vmatpush.msra.mxu0 0.0
    %438 = vmatpush.msra.mxu0 0.0
    %439 = vmatpush.msra.mxu0 0.0
    %440 = vmatpush.msra.mxu0 0.0
    %441 = vmatpush.msra.mxu0 0.0
    %442 = vmatpush.msra.mxu0 0.0
    %443 = vmatpush.msra.mxu0 0.0
    %444 = vmatpush.msra.mxu0 0.0
    %445 = vmatpush.msra.mxu0 0.0
    %446 = vmatpush.msra.mxu0 0.0
    %447 = vmatpush.msra.mxu0 0.0
    %448 = vmatpush.msra.mxu0 0.0
    %449 = vmatpush.msra.mxu0 0.0
    %450 = vmatpush.msra.mxu0 0.0
    %451 = vmatpush.msra.mxu0 0.0
    %452 = vmatpush.msra.mxu0 %v110
    %453 = vmatmul.f32.gmra.mxu0 %v435
    %v454 = vpop.f32.mrf.mxu0
    %v455 = vadd.f32 0.0, %v454
    %456 = vdwg.mxu0
    %v458 = vsel %vm135, %v430, 0
    %460 = vmatpush.msra.mxu0 0.0
    %461 = vmatpush.msra.mxu0 0.0
    %462 = vmatpush.msra.mxu0 0.0
    %463 = vmatpush.msra.mxu0 0.0
    %464 = vmatpush.msra.mxu0 0.0
    %465 = vmatpush.msra.mxu0 0.0
    %466 = vmatpush.msra.mxu0 0.0
    %467 = vmatpush.msra.mxu0 0.0
    %468 = vmatpush.msra.mxu0 0.0
    %469 = vmatpush.msra.mxu0 0.0
    %470 = vmatpush.msra.mxu0 0.0
    %471 = vmatpush.msra.mxu0 0.0
    %472 = vmatpush.msra.mxu0 0.0
    %473 = vmatpush.msra.mxu0 0.0
    %474 = vmatpush.msra.mxu0 0.0
    %475 = vmatpush.msra.mxu0 %v359
    %476 = vmatmul.f32.gmra.mxu0 %v458
    %v477 = vpop.f32.mrf.mxu0
    %v478 = vadd.f32 %v455, %v477
    %479 = vdwg.mxu0
    %v481 = vsel %vm165, %v478, 0
    %483 = vmatpush.msra.mxu0 0.0
    %484 = vmatpush.msra.mxu0 0.0
    %485 = vmatpush.msra.mxu0 0.0
    %486 = vmatpush.msra.mxu0 0.0
    %487 = vmatpush.msra.mxu0 0.0
    %488 = vmatpush.msra.mxu0 0.0
    %489 = vmatpush.msra.mxu0 0.0
    %490 = vmatpush.msra.mxu0 0.0
    %491 = vmatpush.msra.mxu0 0.0
    %492 = vmatpush.msra.mxu0 0.0
    %493 = vmatpush.msra.mxu0 0.0
    %494 = vmatpush.msra.mxu0 0.0
    %495 = vmatpush.msra.mxu0 0.0
    %496 = vmatpush.msra.mxu0 0.0
    %497 = vmatpush.msra.mxu0 %v365
    %498 = vmatpush.msra.mxu0 %v364
    %499 = vmatmul.f32.gmra.mxu0 %v481
    %v500 = vpop.f32.mrf.mxu0
    %v501 = vadd.f32 0.0, %v500
    %502 = vdwg.mxu0
    %v504 = vsel %vm165, %v423, 0
    %506 = vmatpush.msra.mxu0 0.0
    %507 = vmatpush.msra.mxu0 0.0
    %508 = vmatpush.msra.mxu0 0.0
    %509 = vmatpush.msra.mxu0 0.0
    %510 = vmatpush.msra.mxu0 0.0
    %511 = vmatpush.msra.mxu0 0.0
    %512 = vmatpush.msra.mxu0 0.0
    %513 = vmatpush.msra.mxu0 0.0
    %514 = vmatpush.msra.mxu0 0.0
    %515 = vmatpush.msra.mxu0 0.0
    %516 = vmatpush.msra.mxu0 0.0
    %517 = vmatpush.msra.mxu0 0.0
    %518 = vmatpush.msra.mxu0 0.0
    %519 = vmatpush.msra.mxu0 0.0
    %520 = vmatpush.msra.mxu0 %v363
    %521 = vmatpush.msra.mxu0 %v362
    %522 = vmatmul.f32.gmra.mxu0 %v504
    %v523 = vpop.f32.mrf.mxu0
    %v524 = vadd.f32 %v501, %v523
    %525 = vdwg.mxu0
    %v527 = vperm.slane %v366, 0
    %v529 = vadd.f32 %v524, %v527
    %v530 = vmin.f32 %v529, 0.0
    %v531 = vmul.f32 %v530, 1.442695
    %v532 = vpow.pop %v531
    %v533 = vsub.f32 %v532, 1.0
    %v534 = vmul.f32 %v533, 1.6732632
    %vm535 = vcmp.gt.f32.partialorder %v529, 0.0
    %v536 = vsel %vm535, %v529, %v534
    %v537 = vmul.f32 %v536, 1.050701
    %v539 = vperm.slane %v367, 0
    %v541 = vmul.f32 %v537, %v539
    %vm542 = vcmask 523264
    %v543 = vsel %vm542, %v541, 0.0
    %544 = vadd.xlane.f32.xlu0 %v543
    %v545 = vpop.xlane.xlu0 %544
    %v547 = vperm.slane %v368, 0
    %v549 = vadd.f32 %v545, %v547
    %vm550 = vcmask 7168
    %551 = vst.msk [vmem:[%s18] sm:$0xff] %vm550, %v549
    // Predicated region
    $region78: #{tpu_custom_call.1} parent=1 // pred_check
      _
    $region79: #{tpu_custom_call.1} parent=1 // pred_check_branch
      %553 = sbr.rel (0) target = $region81
    $region80: #{tpu_custom_call.1} parent=1 // pred_region
      _
    $region81: #{tpu_custom_call.1} parent=1 // pred_fallthru
      _
    // Predicated region
    $region82: #{tpu_custom_call.1} parent=1 // pred_check
      _
    $region83: #{tpu_custom_call.1} parent=1 // pred_check_branch
      %555 = sbr.rel (0) target = $region85
    $region84: #{tpu_custom_call.1} parent=1 // pred_region
      _
    $region85: #{tpu_custom_call.1} parent=1 // pred_fallthru
      _
    %556 = vsyncpa [#allocation4], 1

</llo_original>
